<compile_context>
chip_gen: v6e
topology: v6e:2x2x1
jax: 0.10.0
libtpu: 0.0.40
codegen_flags: <defaults>
</compile_context>

<pallas_src>
import functools
import math

import jax
import jax.numpy as jnp
from jax.experimental import pallas as pl
from jax.experimental.pallas import tpu as pltpu


# ----------------------------------------------------------------------------
# Kernels
# ----------------------------------------------------------------------------
def _self_attn_kernel(x_ref, w_ref, b_ref, o_ref, *, dim_attn):
    """Self-attention path (kv is None): fused Q/K/V projection.

    x_ref: (BLK_B, S, D)
    w_ref: (D, 2A + D)   -- [Wq.T | Wk.T | Wv.T]  (pre-transposed on host)
    b_ref: (1, 2A + D)   -- [bq | bk | bv]
    o_ref: (BLK_B, S, D)
    """
    blk_b, S, D = x_ref.shape
    A = dim_attn

    x2 = x_ref[...].astype(jnp.float32).reshape(blk_b * S, D)   # leading-dim merge
    w = w_ref[...].astype(jnp.float32)
    b = b_ref[...].astype(jnp.float32)

    # One wide MXU matmul for all three projections, bias folded in once.
    fused = jnp.dot(x2, w, preferred_element_type=jnp.float32) + b   # (BLK_B*S, 2A+D)

    q = fused[:, :A].reshape(blk_b, S, A)
    k = fused[:, A:2 * A].reshape(blk_b, S, A)
    v = fused[:, 2 * A:].reshape(blk_b, S, D)

    scale = 1.0 / math.sqrt(float(A))
    s = jnp.einsum("bqa,bka->bqk", q, k,
                   preferred_element_type=jnp.float32) * scale       # (BLK_B, S, S)

    # softmax over last axis (matches torch.softmax(m, -1))
    s = s - jnp.max(s, axis=-1, keepdims=True)
    p = jnp.exp(s)
    p = p * pl.reciprocal(jnp.sum(p, axis=-1, keepdims=True), approx=True)

    out = jnp.einsum("bqk,bkd->bqd", p, v,
                     preferred_element_type=jnp.float32)              # (BLK_B, S, D)
    o_ref[...] = out.astype(o_ref.dtype)


def _cross_attn_kernel(x_ref, kv_ref, wq_ref, bq_ref, wkv_ref, bkv_ref, o_ref,
                       *, dim_attn):
    """Cross-attention path (kv provided): Q from x, fused K/V from kv.

    x_ref:   (BLK_B, S,   D)
    kv_ref:  (BLK_B, Skv, D)
    wq_ref:  (D, A),      bq_ref:  (1, A)
    wkv_ref: (D, A + D),  bkv_ref: (1, A + D)   -- [Wk.T | Wv.T], [bk | bv]
    o_ref:   (BLK_B, S, D)
    """
    blk_b, S, D = x_ref.shape
    _, Skv, _ = kv_ref.shape
    A = dim_attn

    x2 = x_ref[...].astype(jnp.float32).reshape(blk_b * S, D)
    kv2 = kv_ref[...].astype(jnp.float32).reshape(blk_b * Skv, D)

    q = (jnp.dot(x2, wq_ref[...].astype(jnp.float32),
                 preferred_element_type=jnp.float32)
         + bq_ref[...].astype(jnp.float32)).reshape(blk_b, S, A)

    kvp = (jnp.dot(kv2, wkv_ref[...].astype(jnp.float32),
                   preferred_element_type=jnp.float32)
           + bkv_ref[...].astype(jnp.float32))                         # (BLK_B*Skv, A+D)
    k = kvp[:, :A].reshape(blk_b, Skv, A)
    v = kvp[:, A:].reshape(blk_b, Skv, D)

    scale = 1.0 / math.sqrt(float(A))
    s = jnp.einsum("bqa,bka->bqk", q, k,
                   preferred_element_type=jnp.float32) * scale        # (BLK_B, S, Skv)
    s = s - jnp.max(s, axis=-1, keepdims=True)
    p = jnp.exp(s)
    p = p * pl.reciprocal(jnp.sum(p, axis=-1, keepdims=True), approx=True)

    out = jnp.einsum("bqk,bkd->bqd", p, v,
                     preferred_element_type=jnp.float32)
    o_ref[...] = out.astype(o_ref.dtype)


# ----------------------------------------------------------------------------
# Wrapper
# ----------------------------------------------------------------------------
def _pick_blk_b(B, S):
    """Batch rows per grid step toward ~128 MXU rows, but keep >=2 grid steps
    (when B >= 2) so the parallel batch axis can shard across 2 TCs (v7x)."""
    target = max(1, 128 // max(S, 1))
    blk = 1
    for cand in range(1, min(B, target) + 1):
        if B % cand == 0:
            blk = cand
    if B // blk < 2:
        for cand in range(blk - 1, 0, -1):
            if B % cand == 0 and B // cand >= 2:
                blk = cand
                break
    return blk


def sensor_attention_block(x, params, kv=None):
    """x: (B, S, dim_val); kv: optional (B, Skv, dim_val). Returns (B, S, dim_val)."""
    B, S, D = x.shape
    wq, bq = params["wq"], params["bq"]     # (A, D), (1, A)  (PyTorch convention)
    wk, bk = params["wk"], params["bk"]     # (A, D), (1, A)
    wv, bv = params["wv"], params["bv"]     # (D, D), (1, D)
    A = wq.shape[0]

    blk_b = _pick_blk_b(B, S)
    grid = (B // blk_b,)
    full = lambda shape: pl.BlockSpec(shape, lambda b: tuple(0 for _ in shape))
    cparams = pltpu.CompilerParams(dimension_semantics=("parallel",))

    if kv is None:
        # One-time host-side transpose + fusion of the three projections.
        w_all = jnp.concatenate([wq.T, wk.T, wv.T], axis=1)   # (D, 2A + D)
        b_all = jnp.concatenate([bq, bk, bv], axis=1)         # (1, 2A + D)
        return pl.pallas_call(
            functools.partial(_self_attn_kernel, dim_attn=A),
            out_shape=jax.ShapeDtypeStruct((B, S, D), x.dtype),
            grid_spec=pltpu.PrefetchScalarGridSpec(
                num_scalar_prefetch=0,
                grid=grid,
                in_specs=[
                    pl.BlockSpec((blk_b, S, D), lambda b: (b, 0, 0)),   # x
                    full((D, 2 * A + D)),                               # W_all
                    full((1, 2 * A + D)),                               # b_all
                ],
                out_specs=pl.BlockSpec((blk_b, S, D), lambda b: (b, 0, 0)),
            ),
            compiler_params=cparams,
        )(x, w_all, b_all)

    # kv provided: Q projection from x, fused K/V projection from kv.
    Skv = kv.shape[1]
    wq_t = wq.T                                                # (D, A)
    w_kv = jnp.concatenate([wk.T, wv.T], axis=1)               # (D, A + D)
    b_kv = jnp.concatenate([bk, bv], axis=1)                   # (1, A + D)
    return pl.pallas_call(
        functools.partial(_cross_attn_kernel, dim_attn=A),
        out_shape=jax.ShapeDtypeStruct((B, S, D), x.dtype),
        grid_spec=pltpu.PrefetchScalarGridSpec(
            num_scalar_prefetch=0,
            grid=grid,
            in_specs=[
                pl.BlockSpec((blk_b, S, D), lambda b: (b, 0, 0)),       # x
                pl.BlockSpec((blk_b, Skv, D), lambda b: (b, 0, 0)),     # kv
                full((D, A)),                                            # Wq.T
                full((1, A)),                                            # bq
                full((D, A + D)),                                        # [Wk.T|Wv.T]
                full((1, A + D)),                                        # [bk|bv]
            ],
            out_specs=pl.BlockSpec((blk_b, S, D), lambda b: (b, 0, 0)),
        ),
        compiler_params=cparams,
    )(x, kv, wq_t, bq, w_kv, b_kv)


# ----------------------------------------------------------------------------
# Params / reference / test
# ----------------------------------------------------------------------------
def init_params(key, dim_val, dim_attn):
    """Deterministic synthetic parameters (PyTorch nn.Linear shape convention)."""
    ks = jax.random.split(key, 6)
    scale_v = 1.0 / math.sqrt(dim_val)
    return {
        "wq": jax.random.uniform(ks[0], (dim_attn, dim_val), jnp.float32,
                                 -scale_v, scale_v),
        "bq": jax.random.uniform(ks[1], (1, dim_attn), jnp.float32,
                                 -scale_v, scale_v),
        "wk": jax.random.uniform(ks[2], (dim_attn, dim_val), jnp.float32,
                                 -scale_v, scale_v),
        "bk": jax.random.uniform(ks[3], (1, dim_attn), jnp.float32,
                                 -scale_v, scale_v),
        "wv": jax.random.uniform(ks[4], (dim_val, dim_val), jnp.float32,
                                 -scale_v, scale_v),
        "bv": jax.random.uniform(ks[5], (1, dim_val), jnp.float32,
                                 -scale_v, scale_v),
    }


def _reference(x, params, kv=None):
    """Plain-JAX reference replicating the PyTorch forward exactly."""
    if kv is None:
        kv = x
    q = jnp.einsum("bsd,ad->bsa", x, params["wq"]) + params["bq"][0]
    k = jnp.einsum("bsd,ad->bsa", kv, params["wk"]) + params["bk"][0]
    v = jnp.einsum("bsd,ed->bse", kv, params["wv"]) + params["bv"][0]
    m = jnp.einsum("bsa,bta->bst", q, k) / jnp.sqrt(jnp.float32(q.shape[-1]))
    a = jax.nn.softmax(m, axis=-1)
    return jnp.einsum("bst,btd->bsd", a, v)


if __name__ == "__main__":
    B, S, Skv, dim_val, dim_attn = 2, 8, 16, 32, 16

    key = jax.random.PRNGKey(0)
    kx, kkv, kp = jax.random.split(key, 3)
    x = jax.random.normal(kx, (B, S, dim_val), dtype=jnp.float32)
    kv = jax.random.normal(kkv, (B, Skv, dim_val), dtype=jnp.float32)
    params = init_params(kp, dim_val, dim_attn)

    # Self-attention path (kv=None), the module's default.
    out_self = jax.block_until_ready(sensor_attention_block(x, params))
    ref_self = _reference(x, params)
    assert out_self.shape == (B, S, dim_val)
    assert jnp.max(jnp.abs(out_self - ref_self)) < 2e-3, "self-attn mismatch"

    # Cross-attention path (explicit kv).
    out_cross = jax.block_until_ready(sensor_attention_block(x, params, kv))
    ref_cross = _reference(x, params, kv)
    assert out_cross.shape == (B, S, dim_val)
    assert jnp.max(jnp.abs(out_cross - ref_cross)) < 2e-3, "cross-attn mismatch"

    print("KERNEL_OK")
</pallas_src>

<mosaic_0001>
module attributes {stable_mosaic.version = 11 : i64} {
  func.func @_self_attn_kernel(%arg0: i32, %arg1: memref<1x8x32xf32, #tpu.memory_space<vmem>>, %arg2: memref<32x64xf32, #tpu.memory_space<vmem>>, %arg3: memref<1x64xf32, #tpu.memory_space<vmem>>, %arg4: memref<1x8x32xf32, #tpu.memory_space<vmem>>) attributes {dimension_semantics = [#tpu.dimension_semantics<parallel>], iteration_bounds = array<i64: 2>, scalar_prefetch = 0 : i64, scratch_operands = 0 : i64, tpu.core_type = #tpu.core_type<tc>, window_params = [{transform_indices = @transform_0, window_bounds = array<i64: 1, 8, 32>}, {pipeline_mode = #tpu.pipeline_mode<synchronous>, transform_indices = @transform_1, window_bounds = array<i64: 32, 64>}, {pipeline_mode = #tpu.pipeline_mode<synchronous>, transform_indices = @transform_2, window_bounds = array<i64: 1, 64>}, {transform_indices = @transform_3, window_bounds = array<i64: 1, 8, 32>}]} {
    %c0 = arith.constant 0 : index
    %c0_0 = arith.constant 0 : index
    %c0_1 = arith.constant 0 : index
    %0 = vector.load %arg1[%c0, %c0_0, %c0_1] : memref<1x8x32xf32, #tpu.memory_space<vmem>>, vector<1x8x32xf32>
    %1 = vector.shape_cast %0 : vector<1x8x32xf32> to vector<8x32xf32>
    %c0_2 = arith.constant 0 : index
    %c0_3 = arith.constant 0 : index
    %2 = vector.load %arg2[%c0_2, %c0_3] : memref<32x64xf32, #tpu.memory_space<vmem>>, vector<32x64xf32>
    %c0_4 = arith.constant 0 : index
    %c0_5 = arith.constant 0 : index
    %3 = vector.load %arg3[%c0_4, %c0_5] : memref<1x64xf32, #tpu.memory_space<vmem>>, vector<1x64xf32>
    %cst = arith.constant dense<0.000000e+00> : vector<8x64xf32>
    %4 = tpu.matmul %1, %2, %cst {dimension_numbers = #tpu.dot_dimension_numbers<[1], [0], [0], [1], [0, 0, 1, 1], [], []>} : vector<8x32xf32>, vector<32x64xf32>, vector<8x64xf32> -> vector<8x64xf32>
    %5 = vector.broadcast %3 : vector<1x64xf32> to vector<8x64xf32>
    %6 = arith.addf %4, %5 : vector<8x64xf32>
    %7 = vector.extract_strided_slice %6 {offsets = [0, 0], sizes = [8, 16], strides = [1, 1]} : vector<8x64xf32> to vector<8x16xf32>
    %8 = vector.shape_cast %7 : vector<8x16xf32> to vector<1x8x16xf32>
    %9 = vector.extract_strided_slice %6 {offsets = [0, 16], sizes = [8, 16], strides = [1, 1]} : vector<8x64xf32> to vector<8x16xf32>
    %10 = vector.shape_cast %9 : vector<8x16xf32> to vector<1x8x16xf32>
    %11 = vector.extract_strided_slice %6 {offsets = [0, 32], sizes = [8, 32], strides = [1, 1]} : vector<8x64xf32> to vector<8x32xf32>
    %12 = vector.shape_cast %11 : vector<8x32xf32> to vector<1x8x32xf32>
    "tpu.trace_start"() <{level = 10 : i32, message = "bqa,bka->bqk"}> : () -> ()
    %cst_6 = arith.constant dense<0.000000e+00> : vector<1x8x8xf32>
    %13 = tpu.matmul %8, %10, %cst_6 {dimension_numbers = #tpu.dot_dimension_numbers<[2], [2], [1], [1], [0, 0, 0, 1, 1, 1], [0], [0]>} : vector<1x8x16xf32>, vector<1x8x16xf32>, vector<1x8x8xf32> -> vector<1x8x8xf32>
    "tpu.trace_stop"() : () -> ()
    %cst_7 = arith.constant 2.500000e-01 : f32
    %14 = vector.broadcast %cst_7 : f32 to vector<1x8x8xf32>
    %15 = arith.mulf %13, %14 : vector<1x8x8xf32>
    %cst_8 = arith.constant dense<0xFF800000> : vector<1x8xf32>
    %16 = vector.multi_reduction <maximumf>, %15, %cst_8 [2] : vector<1x8x8xf32> to vector<1x8xf32>
    %17 = vector.shape_cast %16 : vector<1x8xf32> to vector<1x8x1xf32>
    %18 = vector.broadcast %17 : vector<1x8x1xf32> to vector<1x8x8xf32>
    %19 = arith.subf %15, %18 : vector<1x8x8xf32>
    %20 = math.exp %19 : vector<1x8x8xf32>
    %cst_9 = arith.constant dense<0.000000e+00> : vector<1x8xf32>
    %21 = vector.multi_reduction <add>, %20, %cst_9 [2] : vector<1x8x8xf32> to vector<1x8xf32>
    %22 = vector.shape_cast %21 : vector<1x8xf32> to vector<1x8x1xf32>
    %23 = tpu.reciprocal %22 {approx = true} : vector<1x8x1xf32> -> vector<1x8x1xf32>
    %24 = vector.broadcast %23 : vector<1x8x1xf32> to vector<1x8x8xf32>
    %25 = arith.mulf %20, %24 : vector<1x8x8xf32>
    "tpu.trace_start"() <{level = 10 : i32, message = "bqk,bkd->bqd"}> : () -> ()
    %cst_10 = arith.constant dense<0.000000e+00> : vector<1x8x32xf32>
    %26 = tpu.matmul %25, %12, %cst_10 {dimension_numbers = #tpu.dot_dimension_numbers<[2], [1], [1], [2], [0, 0, 0, 1, 1, 2], [0], [0]>} : vector<1x8x8xf32>, vector<1x8x32xf32>, vector<1x8x32xf32> -> vector<1x8x32xf32>
    "tpu.trace_stop"() : () -> ()
    %c0_11 = arith.constant 0 : index
    %c0_12 = arith.constant 0 : index
    %c0_13 = arith.constant 0 : index
    %27 = vector.load %arg4[%c0_11, %c0_12, %c0_13] : memref<1x8x32xf32, #tpu.memory_space<vmem>>, vector<1x8x32xf32>
    tpu.vector_store %arg4[%c0_11, %c0_12, %c0_13], %26 {strides = array<i32>} : memref<1x8x32xf32, #tpu.memory_space<vmem>>, vector<1x8x32xf32>,
    return
  }
  func.func @transform_0(%arg0: i32) -> (i32, i32, i32) {
    %c0_i32 = arith.constant 0 : i32
    %c0_i32_0 = arith.constant 0 : i32
    %c0_i32_1 = arith.constant 0 : i32
    return %arg0, %c0_i32, %c0_i32_0 : i32, i32, i32
  }
  func.func @transform_1(%arg0: i32) -> (i32, i32) {
    %c0_i32 = arith.constant 0 : i32
    %c0_i32_0 = arith.constant 0 : i32
    %c0_i32_1 = arith.constant 0 : i32
    return %c0_i32, %c0_i32_0 : i32, i32
  }
  func.func @transform_2(%arg0: i32) -> (i32, i32) {
    %c0_i32 = arith.constant 0 : i32
    %c0_i32_0 = arith.constant 0 : i32
    %c0_i32_1 = arith.constant 0 : i32
    return %c0_i32, %c0_i32_0 : i32, i32
  }
  func.func @transform_3(%arg0: i32) -> (i32, i32, i32) {
    %c0_i32 = arith.constant 0 : i32
    %c0_i32_0 = arith.constant 0 : i32
    %c0_i32_1 = arith.constant 0 : i32
    return %arg0, %c0_i32, %c0_i32_0 : i32, i32, i32
  }
}

</mosaic_0001>

<llo_original>
// kernel: tpu_custom_call.1
$region0: #{tpu_custom_call.1}
  #allocation0 [shape = 'u32[]', space=smem, size = 0x4, offset = 0x4, fixed_abs, tag = 'smem constant byte address 0x4 - core index']
  #allocation1 [shape = 'u32[144,128]{1,0:T(1,128)}', space=vmem, size = 0x12000, scoped, tag = 'internal scratch']
  %s0 = inlined_call_operand.hbm [shape: f32[2,8,32], index: 0, kind: input, shape index: {}]
  %s1 = inlined_call_operand.hbm [shape: f32[32,64], index: 1, kind: input, shape index: {}]
  %s2 = inlined_call_operand.vmem [shape: f32[1,64], index: 2, kind: input, shape index: {}]
  %s3 = inlined_call_operand.hbm [shape: f32[2,8,32], index: 3, kind: output, shape index: {}]
  %s4 = sld [smem:[#allocation0]]
  $region53: #{tpu_custom_call.1} parent=0
    _
  %s6 = ssub.s32 1, %s4
  %s7 = scalar_select 0, %s6, %s4
  $region1: #{tpu_custom_call.1} parent=0
    #allocation2 [shape = 'u8[8192]{0}', space=vmem, size = 0x2000, scoped, tag = 'input window, operand 0']
    #allocation3 [shape = 's32[2]{0}', space=sflag, size = 0x8, scoped, tag = 'scoped memory for tpu_custom_call.1']
    #allocation4 [shape = 's32[2]{0}', space=sflag, size = 0x8, scoped, tag = 'scoped memory for tpu_custom_call.1']
    #allocation5 [shape = 'u8[16384]{0}', space=vmem, size = 0x4000, scoped, tag = 'input window, operand 1, single buffered']
    #allocation6 [shape = 's32[1]{0}', space=sflag, size = 0x4, scoped, tag = 'scoped memory for tpu_custom_call.1']
    #allocation7 [shape = 'u8[8192]{0}', space=vmem, size = 0x2000, scoped, tag = 'output window, operand 0']
    %8 = vsyncpa [#allocation3], 0
    %s9 = scalar_lea.sflag [#allocation3], 1
    %10 = vsyncpa %s9, 0
    %11 = vsyncpa [#allocation6], 0
    %12 = vsyncpa [#allocation4], 0
    %s13 = scalar_lea.sflag [#allocation4], 1
    %14 = vsyncpa %s13, 0
    loop: start=0, step=1, limit=4
    $region2: #{tpu_custom_call.1} parent=1 // loop_pre_header
      _
    $region3: #{tpu_custom_call.1} parent=1 // loop_header
      %s16 = sphi 0, %s20
      %p17 = scmp.ge.s32.totalorder %s16, 4
      %s26 = sphi 0, %s28
      %s29 = sphi 0, %s26
      %s30 = sphi 0, %s29
      %s46 = sphi 0, %s30
      %s50 = sphi 0, %s50
      %s52 = sphi 0, %s50
      %s53 = sphi 0, %s52
      %s67 = sphi 0, %s53
      %s71 = sphi 0, %s71
      %s73 = sphi 0, %s71
      %s74 = sphi 0, %s73
      %s88 = sphi 0, %s74
      %s94 = sphi 0, %s96
      %s97 = sphi 0, %s94
      %s98 = sphi 0, %s97
      %s114 = sphi 0, %s98
    $region4: #{tpu_custom_call.1} parent=1 // loop_header_branch
      %19 = sbr.rel (%p17) target = $region8
    $region5: #{tpu_custom_call.1} parent=1 // loop_body
      %s21 = ssub.s32 %s16, 1
      %s22 = ssub.s32 %s16, 2
      %s23 = sadd.s32 %s16, 1
      %s24 = ssub.s32 %s16, %s23
      %p25 = scmp.eq.s32.totalorder %s24, 0
      %s27 = sadd.s32 %s26, 1
      %s28 = scalar_select %p25, %s26, %s27
      %p31 = pneg %p25
      %p32 = scmp.eq.s32.totalorder %s16, 1
      %p33 = por %p31, %p32
      %p34 = scmp.ne.s32.totalorder %s26, %s29
      %p35 = scmp.eq.s32.totalorder %s16, 0
      %p36 = por %p34, %p35
      %p37 = scmp.ne.s32.totalorder %s26, %s29
      %p38 = scmp.eq.s32.totalorder %s21, 1
      %p39 = por %p37, %p38
      %p40 = scmp.ne.s32.totalorder %s29, %s30
      %p41 = scmp.eq.s32.totalorder %s21, 0
      %p42 = por %p40, %p41
      %p43 = scmp.ne.s32.totalorder %s29, %s30
      %p44 = scmp.eq.s32.totalorder %s22, 1
      %p45 = por %p43, %p44
      %p47 = scmp.ne.s32.totalorder %s30, %s46
      %p48 = scmp.eq.s32.totalorder %s22, 0
      %p49 = por %p47, %p48
      %s51 = sadd.s32 %s50, 1
      %p54 = scmp.eq.s32.totalorder %s16, 1
      %p55 = scmp.ne.s32.totalorder %s50, %s52
      %p56 = scmp.eq.s32.totalorder %s16, 0
      %p57 = por %p55, %p56
      %p58 = scmp.ne.s32.totalorder %s50, %s52
      %p59 = scmp.eq.s32.totalorder %s21, 1
      %p60 = por %p58, %p59
      %p61 = scmp.ne.s32.totalorder %s52, %s53
      %p62 = scmp.eq.s32.totalorder %s21, 0
      %p63 = por %p61, %p62
      %p64 = scmp.ne.s32.totalorder %s52, %s53
      %p65 = scmp.eq.s32.totalorder %s22, 1
      %p66 = por %p64, %p65
      %p68 = scmp.ne.s32.totalorder %s53, %s67
      %p69 = scmp.eq.s32.totalorder %s22, 0
      %p70 = por %p68, %p69
      %s72 = sadd.s32 %s71, 1
      %p75 = scmp.eq.s32.totalorder %s16, 1
      %p76 = scmp.ne.s32.totalorder %s71, %s73
      %p77 = scmp.eq.s32.totalorder %s16, 0
      %p78 = por %p76, %p77
      %p79 = scmp.ne.s32.totalorder %s71, %s73
      %p80 = scmp.eq.s32.totalorder %s21, 1
      %p81 = por %p79, %p80
      %p82 = scmp.ne.s32.totalorder %s73, %s74
      %p83 = scmp.eq.s32.totalorder %s21, 0
      %p84 = por %p82, %p83
      %p85 = scmp.ne.s32.totalorder %s73, %s74
      %p86 = scmp.eq.s32.totalorder %s22, 1
      %p87 = por %p85, %p86
      %p89 = scmp.ne.s32.totalorder %s74, %s88
      %p90 = scmp.eq.s32.totalorder %s22, 0
      %p91 = por %p89, %p90
      %s92 = ssub.s32 %s16, %s23
      %p93 = scmp.eq.s32.totalorder %s92, 0
      %s95 = sadd.s32 %s94, 1
      %s96 = scalar_select %p93, %s94, %s95
      %p99 = pneg %p93
      %p100 = scmp.eq.s32.totalorder %s16, 1
      %p101 = por %p99, %p100
      %p102 = scmp.ne.s32.totalorder %s94, %s97
      %p103 = scmp.eq.s32.totalorder %s16, 0
      %p104 = por %p102, %p103
      %p105 = scmp.ne.s32.totalorder %s94, %s97
      %p106 = scmp.eq.s32.totalorder %s21, 1
      %p107 = por %p105, %p106
      %p108 = scmp.ne.s32.totalorder %s97, %s98
      %p109 = scmp.eq.s32.totalorder %s21, 0
      %p110 = por %p108, %p109
      %p111 = scmp.ne.s32.totalorder %s97, %s98
      %p112 = scmp.eq.s32.totalorder %s22, 1
      %p113 = por %p111, %p112
      %p115 = scmp.ne.s32.totalorder %s98, %s114
      %p116 = scmp.eq.s32.totalorder %s22, 0
      %p117 = por %p115, %p116
      %p118 = scmp.le.s32.totalorder 1, %s16
      %p119 = scmp.lt.s32.totalorder %s16, 3
      %p120 = pnand %p118, %p119
      %p121 = pneg %p120
      // Predicated region
      $region9: #{tpu_custom_call.1} parent=5 // pred_check
        _
      $region10: #{tpu_custom_call.1} parent=5 // pred_check_branch
        %123 = sbr.rel (%p120) target = $region12
      $region11: #{tpu_custom_call.1} parent=5 // pred_region
        %s124 = ssub.s32 %s16, 1
        // Predicated region
        $region13: #{tpu_custom_call.1} parent=11 // pred_check
          %p125 = pneg %p63
        $region14: #{tpu_custom_call.1} parent=11 // pred_check_branch
          %127 = sbr.rel (%p125) target = $region16
        $region15: #{tpu_custom_call.1} parent=11 // pred_region
          %s129 = ssub.s32 512, 512
          %130 = vsyncadd [#allocation6], %s129
          %s131 = sshll.u32 [#allocation5], 4
          %s132 = int_to_ptr.vmem [resolvable:$true] %s131
          %137 = dma.hbm_to_vmem [thread:$0]  %s1, 512, %s132, [#allocation6], 128, 128, 8
        $region16: #{tpu_custom_call.1} parent=11 // pred_fallthru
          _
        // Predicated region
        $region17: #{tpu_custom_call.1} parent=11 // pred_check
          %p138 = pneg %p84
        $region18: #{tpu_custom_call.1} parent=11 // pred_check_branch
          %140 = sbr.rel (%p138) target = $region20
        $region19: #{tpu_custom_call.1} parent=11 // pred_region
          _
        $region20: #{tpu_custom_call.1} parent=11 // pred_fallthru
          _
      $region12: #{tpu_custom_call.1} parent=5 // pred_fallthru
        _
      %p141 = scmp.lt.s32.totalorder %s16, 2
      // Predicated region
      $region21: #{tpu_custom_call.1} parent=5 // pred_check
        %p142 = pneg %p141
      $region22: #{tpu_custom_call.1} parent=5 // pred_check_branch
        %144 = sbr.rel (%p142) target = $region24
      $region23: #{tpu_custom_call.1} parent=5 // pred_region
        // Predicated region
        $region25: #{tpu_custom_call.1} parent=23 // pred_check
          %p145 = pneg %p36
        $region26: #{tpu_custom_call.1} parent=23 // pred_check_branch
          %147 = sbr.rel (%p145) target = $region28
        $region27: #{tpu_custom_call.1} parent=23 // pred_region
          %s148 = sand.u32 %s26, 1
          %s149 = scalar_lea.sflag [#allocation3], %s148
          %s150 = sand.u32 %s26, 1
          %s151 = smul.addr %s150, 8
          %s152 = scalar_lea.vmem [#allocation2], %s151
          %s154 = ssub.s32 128, 128
          %155 = vsyncadd %s149, %s154
          %s156 = smul.addr %s16, 128
          %s157 = scalar_lea.hbm %s0, %s156
          %s159 = sshll.u32 %s152, 4
          %s160 = int_to_ptr.vmem [resolvable:$true] %s159
          %162 = dma.hbm_to_vmem [thread:$0]  %s157, 128, %s160, %s149
        $region28: #{tpu_custom_call.1} parent=23 // pred_fallthru
          _
      $region24: #{tpu_custom_call.1} parent=5 // pred_fallthru
        _
      %p163 = scmp.le.s32.totalorder 1, %s16
      %p164 = scmp.lt.s32.totalorder %s16, 3
      %p165 = pnand %p163, %p164
      %p166 = pneg %p165
      // Predicated region
      $region29: #{tpu_custom_call.1} parent=5 // pred_check
        _
      $region30: #{tpu_custom_call.1} parent=5 // pred_check_branch
        %168 = sbr.rel (%p165) target = $region32
      $region31: #{tpu_custom_call.1} parent=5 // pred_region
        %s169 = ssub.s32 %s16, 1
        %s170 = sand.u32 %s29, 1
        %s171 = scalar_lea.sflag [#allocation3], %s170
        %s172 = sand.u32 %s29, 1
        %s173 = smul.addr %s172, 8
        %s174 = scalar_lea.vmem [#allocation2], %s173
        // Predicated region
        $region33: #{tpu_custom_call.1} parent=31 // pred_check
          %p175 = pneg %p42
        $region34: #{tpu_custom_call.1} parent=31 // pred_check_branch
          %177 = sbr.rel (%p175) target = $region36
        $region35: #{tpu_custom_call.1} parent=31 // pred_region
          %178 = dma.done %s171, 128
        $region36: #{tpu_custom_call.1} parent=31 // pred_fallthru
          _
        // Predicated region
        $region37: #{tpu_custom_call.1} parent=31 // pred_check
          %p179 = pneg %p63
        $region38: #{tpu_custom_call.1} parent=31 // pred_check_branch
          %181 = sbr.rel (%p179) target = $region40
        $region39: #{tpu_custom_call.1} parent=31 // pred_region
          %182 = dma.done [#allocation6], 512
        $region40: #{tpu_custom_call.1} parent=31 // pred_fallthru
          _
        %s183 = sand.u32 %s29, 1
        %s184 = scalar_lea.sflag [#allocation3], %s183
        %s185 = sand.u32 %s29, 1
        %s186 = smul.addr %s185, 8
        %s187 = scalar_lea.vmem [#allocation2], %s186
        %p188 = pneg %p42
        %p189 = pneg %p39
        %p190 = pneg %p63
        %p191 = pneg %p60
        %p192 = pneg %p84
        %p193 = pneg %p81
        %p194 = pneg %p110
        %p195 = pneg %p107
        %s196 = sand.u32 %s97, 1
        %s197 = scalar_lea.sflag [#allocation4], %s196
        %s198 = sand.u32 %s97, 1
        %s199 = smul.addr %s198, 8
        %s200 = scalar_lea.vmem [#allocation7], %s199
        %v201 = vld [vmem:[%s174] sm:$0xff]
        %v202 = vld [vmem:[#allocation5] sm:$0xff]
        %v203 = vld [vmem:[#allocation5 + $0x8] sm:$0xff]
        %v204 = vld [vmem:[#allocation5 + $0x10] sm:$0xff]
        %v205 = vld [vmem:[#allocation5 + $0x18] sm:$0xff]
        %v206 = vld [vmem:[%s2] sm:$0x1]
        %v208 = vlaneseq
        %v209 = vshrl.u32 %v208, 7
        %v210 = vsub.s32 0, %v209
        %v211 = vrot.slane %v206, %v210
        %vm213 = vcmask 261120
        %v215 = vsel %vm213, %v201, 0
        %217 = vmatprep.subr.mxu0 0.0
        %218 = vmatpush1.msra.mxu0 0.0
        %219 = vmatprep.subr.mxu0 0.0
        %220 = vmatpush1.msra.mxu0 0.0
        %221 = vmatprep.subr.mxu0 0.0
        %222 = vmatpush1.msra.mxu0 0.0
        %223 = vmatprep.subr.mxu0 0.0
        %224 = vmatpush1.msra.mxu0 0.0
        %225 = vmatprep.subr.mxu0 0.0
        %226 = vmatpush1.msra.mxu0 0.0
        %227 = vmatprep.subr.mxu0 0.0
        %228 = vmatpush1.msra.mxu0 0.0
        %229 = vmatprep.subr.mxu0 0.0
        %230 = vmatpush1.msra.mxu0 0.0
        %231 = vmatprep.subr.mxu0 0.0
        %232 = vmatpush1.msra.mxu0 0.0
        %233 = vmatprep.subr.mxu0 0.0
        %234 = vmatpush1.msra.mxu0 0.0
        %235 = vmatprep.subr.mxu0 0.0
        %236 = vmatpush1.msra.mxu0 0.0
        %237 = vmatprep.subr.mxu0 0.0
        %238 = vmatpush1.msra.mxu0 0.0
        %239 = vmatprep.subr.mxu0 0.0
        %240 = vmatpush1.msra.mxu0 0.0
        %241 = vmatprep.subr.mxu0 0.0
        %242 = vmatpush1.msra.mxu0 %v205
        %243 = vmatprep.subr.mxu0 0.0
        %244 = vmatpush1.msra.mxu0 %v204
        %245 = vmatprep.subr.mxu0 0.0
        %246 = vmatpush1.msra.mxu0 %v203
        %247 = vmatprep.subr.mxu0 0.0
        %248 = vmatpush1.msra.mxu0 %v202
        %249 = vmatprep.subr.mxu0 0.0
        %250 = vmatpush2.msra.mxu0 0.0
        %251 = vmatprep.subr.mxu0 0.0
        %252 = vmatpush2.msra.mxu0 0.0
        %253 = vmatprep.subr.mxu0 0.0
        %254 = vmatpush2.msra.mxu0 0.0
        %255 = vmatprep.subr.mxu0 0.0
        %256 = vmatpush2.msra.mxu0 0.0
        %257 = vmatprep.subr.mxu0 0.0
        %258 = vmatpush2.msra.mxu0 0.0
        %259 = vmatprep.subr.mxu0 0.0
        %260 = vmatpush2.msra.mxu0 0.0
        %261 = vmatprep.subr.mxu0 0.0
        %262 = vmatpush2.msra.mxu0 0.0
        %263 = vmatprep.subr.mxu0 0.0
        %264 = vmatpush2.msra.mxu0 0.0
        %265 = vmatprep.subr.mxu0 0.0
        %266 = vmatpush2.msra.mxu0 0.0
        %267 = vmatprep.subr.mxu0 0.0
        %268 = vmatpush2.msra.mxu0 0.0
        %269 = vmatprep.subr.mxu0 0.0
        %270 = vmatpush2.msra.mxu0 0.0
        %271 = vmatprep.subr.mxu0 0.0
        %272 = vmatpush2.msra.mxu0 0.0
        %273 = vmatprep.subr.mxu0 0.0
        %274 = vmatpush2.msra.mxu0 0.0
        %275 = vmatprep.subr.mxu0 0.0
        %276 = vmatpush2.msra.mxu0 0.0
        %277 = vmatprep.subr.mxu0 0.0
        %278 = vmatpush2.msra.mxu0 0.0
        %279 = vmatprep.subr.mxu0 0.0
        %280 = vmatpush2.msra.mxu0 0.0
        %281 = vmatprep.mubr.f32.mxu0 0.0
        %282 = vmatmul.mubr.f32.gmra.mxu0 %v215
        %v283 = vpop.f32.mrf.mxu0
        %v284 = vadd.f32 %v211, %v283
        %v285 = vpop.f32.mrf.mxu0
        %286 = vdwg.mxu0
        %288 = vrot.lane.b32.xlu0 %v284, 112
        %v289 = vpop.permute.xlu0 %288
        %vm290 = vcmask 130048
        %v291 = vsel %vm290, %v284, 0
        %v293 = vsel %vm290, %v289, 0
        %295 = vmatprep.subr.mxu0 0.0
        %296 = vmatpush1.xpose.msra.mxu0 0.0
        %297 = vmatprep.subr.mxu0 0.0
        %298 = vmatpush1.xpose.msra.mxu0 0.0
        %299 = vmatprep.subr.mxu0 0.0
        %300 = vmatpush1.xpose.msra.mxu0 0.0
        %301 = vmatprep.subr.mxu0 0.0
        %302 = vmatpush1.xpose.msra.mxu0 0.0
        %303 = vmatprep.subr.mxu0 0.0
        %304 = vmatpush1.xpose.msra.mxu0 0.0
        %305 = vmatprep.subr.mxu0 0.0
        %306 = vmatpush1.xpose.msra.mxu0 0.0
        %307 = vmatprep.subr.mxu0 0.0
        %308 = vmatpush1.xpose.msra.mxu0 0.0
        %309 = vmatprep.subr.mxu0 0.0
        %310 = vmatpush1.xpose.msra.mxu0 0.0
        %311 = vmatprep.subr.mxu0 0.0
        %312 = vmatpush1.xpose.msra.mxu0 0.0
        %313 = vmatprep.subr.mxu0 0.0
        %314 = vmatpush1.xpose.msra.mxu0 0.0
        %315 = vmatprep.subr.mxu0 0.0
        %316 = vmatpush1.xpose.msra.mxu0 0.0
        %317 = vmatprep.subr.mxu0 0.0
        %318 = vmatpush1.xpose.msra.mxu0 0.0
        %319 = vmatprep.subr.mxu0 0.0
        %320 = vmatpush1.xpose.msra.mxu0 0.0
        %321 = vmatprep.subr.mxu0 0.0
        %322 = vmatpush1.xpose.msra.mxu0 0.0
        %323 = vmatprep.subr.mxu0 0.0
        %324 = vmatpush1.xpose.msra.mxu0 0.0
        %325 = vmatprep.subr.mxu0 0.0
        %326 = vmatpush1.xpose.msra.mxu0 %v293
        %327 = vmatprep.subr.mxu0 0.0
        %328 = vmatpush2.xpose.msra.mxu0 0.0
        %329 = vmatprep.subr.mxu0 0.0
        %330 = vmatpush2.xpose.msra.mxu0 0.0
        %331 = vmatprep.subr.mxu0 0.0
        %332 = vmatpush2.xpose.msra.mxu0 0.0
        %333 = vmatprep.subr.mxu0 0.0
        %334 = vmatpush2.xpose.msra.mxu0 0.0
        %335 = vmatprep.subr.mxu0 0.0
        %336 = vmatpush2.xpose.msra.mxu0 0.0
        %337 = vmatprep.subr.mxu0 0.0
        %338 = vmatpush2.xpose.msra.mxu0 0.0
        %339 = vmatprep.subr.mxu0 0.0
        %340 = vmatpush2.xpose.msra.mxu0 0.0
        %341 = vmatprep.subr.mxu0 0.0
        %342 = vmatpush2.xpose.msra.mxu0 0.0
        %343 = vmatprep.subr.mxu0 0.0
        %344 = vmatpush2.xpose.msra.mxu0 0.0
        %345 = vmatprep.subr.mxu0 0.0
        %346 = vmatpush2.xpose.msra.mxu0 0.0
        %347 = vmatprep.subr.mxu0 0.0
        %348 = vmatpush2.xpose.msra.mxu0 0.0
        %349 = vmatprep.subr.mxu0 0.0
        %350 = vmatpush2.xpose.msra.mxu0 0.0
        %351 = vmatprep.subr.mxu0 0.0
        %352 = vmatpush2.xpose.msra.mxu0 0.0
        %353 = vmatprep.subr.mxu0 0.0
        %354 = vmatpush2.xpose.msra.mxu0 0.0
        %355 = vmatprep.subr.mxu0 0.0
        %356 = vmatpush2.xpose.msra.mxu0 0.0
        %357 = vmatprep.subr.mxu0 0.0
        %358 = vmatpush2.xpose.msra.mxu0 0.0
        %359 = vmatprep.mubr.f32.mxu0 0.0
        %360 = vmatmul.mubr.f32.gmra.mxu0 %v291
        %v361 = vpop.f32.mrf.mxu0
        %v362 = vadd.f32 0.0, %v361
        %v363 = vpop.f32.mrf.mxu0
        %364 = vdwg.mxu0
        %v365 = vmul.f32 %v362, 0.25
        %vm366 = vcmask 64512
        %v367 = vsel %vm366, %v365, -inf
        %368 = vmax.xlane.f32.xlu0 %v367
        %v369 = vpop.xlane.xlu0 %368
        %v370 = vsub.f32 %v365, %v369
        %v371 = vmul.f32 %v370, 1.442695
        %v372 = vpow.pop %v371
        %v373 = vsel %vm366, %v372, 0.0
        %374 = vadd.xlane.f32.xlu0 %v373
        %v375 = vpop.xlane.xlu0 %374
        %v376 = vrcp.pop %v375
        %v377 = vmul.f32 %v372, %v376
        %378 = vrot.lane.b32.xlu0 %v284, 96
        %v379 = vpop.permute.xlu0 %378
        %v382 = vsel %vm366, %v377, 0
        %384 = vmatprep.subr.mxu0 0.0
        %385 = vmatpush1.msra.mxu0 0.0
        %386 = vmatprep.subr.mxu0 0.0
        %387 = vmatpush1.msra.mxu0 0.0
        %388 = vmatprep.subr.mxu0 0.0
        %389 = vmatpush1.msra.mxu0 0.0
        %390 = vmatprep.subr.mxu0 0.0
        %391 = vmatpush1.msra.mxu0 0.0
        %392 = vmatprep.subr.mxu0 0.0
        %393 = vmatpush1.msra.mxu0 0.0
        %394 = vmatprep.subr.mxu0 0.0
        %395 = vmatpush1.msra.mxu0 0.0
        %396 = vmatprep.subr.mxu0 0.0
        %397 = vmatpush1.msra.mxu0 0.0
        %398 = vmatprep.subr.mxu0 0.0
        %399 = vmatpush1.msra.mxu0 0.0
        %400 = vmatprep.subr.mxu0 0.0
        %401 = vmatpush1.msra.mxu0 0.0
        %402 = vmatprep.subr.mxu0 0.0
        %403 = vmatpush1.msra.mxu0 0.0
        %404 = vmatprep.subr.mxu0 0.0
        %405 = vmatpush1.msra.mxu0 0.0
        %406 = vmatprep.subr.mxu0 0.0
        %407 = vmatpush1.msra.mxu0 0.0
        %408 = vmatprep.subr.mxu0 0.0
        %409 = vmatpush1.msra.mxu0 0.0
        %410 = vmatprep.subr.mxu0 0.0
        %411 = vmatpush1.msra.mxu0 0.0
        %412 = vmatprep.subr.mxu0 0.0
        %413 = vmatpush1.msra.mxu0 0.0
        %414 = vmatprep.subr.mxu0 0.0
        %415 = vmatpush1.msra.mxu0 %v379
        %416 = vmatprep.subr.mxu0 0.0
        %417 = vmatpush2.msra.mxu0 0.0
        %418 = vmatprep.subr.mxu0 0.0
        %419 = vmatpush2.msra.mxu0 0.0
        %420 = vmatprep.subr.mxu0 0.0
        %421 = vmatpush2.msra.mxu0 0.0
        %422 = vmatprep.subr.mxu0 0.0
        %423 = vmatpush2.msra.mxu0 0.0
        %424 = vmatprep.subr.mxu0 0.0
        %425 = vmatpush2.msra.mxu0 0.0
        %426 = vmatprep.subr.mxu0 0.0
        %427 = vmatpush2.msra.mxu0 0.0
        %428 = vmatprep.subr.mxu0 0.0
        %429 = vmatpush2.msra.mxu0 0.0
        %430 = vmatprep.subr.mxu0 0.0
        %431 = vmatpush2.msra.mxu0 0.0
        %432 = vmatprep.subr.mxu0 0.0
        %433 = vmatpush2.msra.mxu0 0.0
        %434 = vmatprep.subr.mxu0 0.0
        %435 = vmatpush2.msra.mxu0 0.0
        %436 = vmatprep.subr.mxu0 0.0
        %437 = vmatpush2.msra.mxu0 0.0
        %438 = vmatprep.subr.mxu0 0.0
        %439 = vmatpush2.msra.mxu0 0.0
        %440 = vmatprep.subr.mxu0 0.0
        %441 = vmatpush2.msra.mxu0 0.0
        %442 = vmatprep.subr.mxu0 0.0
        %443 = vmatpush2.msra.mxu0 0.0
        %444 = vmatprep.subr.mxu0 0.0
        %445 = vmatpush2.msra.mxu0 0.0
        %446 = vmatprep.subr.mxu0 0.0
        %447 = vmatpush2.msra.mxu0 0.0
        %448 = vmatprep.mubr.f32.mxu0 0.0
        %449 = vmatmul.mubr.f32.gmra.mxu0 %v382
        %v450 = vpop.f32.mrf.mxu0
        %v451 = vadd.f32 0.0, %v450
        %v452 = vpop.f32.mrf.mxu0
        %453 = vdwg.mxu0
        %454 = vst.msk [vmem:[%s200] sm:$0xff] %vm213, %v451
        %s455 = sand.u32 %s97, 1
        %s456 = scalar_lea.sflag [#allocation4], %s455
        %s457 = sand.u32 %s97, 1
        %s458 = smul.addr %s457, 8
        %s459 = scalar_lea.vmem [#allocation7], %s458
        // Predicated region
        $region41: #{tpu_custom_call.1} parent=31 // pred_check
          %p460 = pneg %p107
        $region42: #{tpu_custom_call.1} parent=31 // pred_check_branch
          %462 = sbr.rel (%p460) target = $region44
        $region43: #{tpu_custom_call.1} parent=31 // pred_region
          %s464 = ssub.s32 128, 128
          %465 = vsyncadd %s456, %s464
          %s466 = smul.addr %s21, 128
          %s467 = scalar_lea.hbm %s3, %s466
          %s469 = sshll.u32 %s459, 4
          %s470 = int_to_ptr.vmem [resolvable:$true] %s469
          %472 = dma.vmem_to_hbm [thread:$0]  %s470, 128, %s467, %s456
        $region44: #{tpu_custom_call.1} parent=31 // pred_fallthru
          _
      $region32: #{tpu_custom_call.1} parent=5 // pred_fallthru
        _
      %p473 = scmp.le.s32.totalorder 2, %s16
      // Predicated region
      $region45: #{tpu_custom_call.1} parent=5 // pred_check
        %p474 = pneg %p473
      $region46: #{tpu_custom_call.1} parent=5 // pred_check_branch
        %476 = sbr.rel (%p474) target = $region48
      $region47: #{tpu_custom_call.1} parent=5 // pred_region
        %s477 = ssub.s32 %s16, 2
        // Predicated region
        $region49: #{tpu_custom_call.1} parent=47 // pred_check
          %p478 = pneg %p113
        $region50: #{tpu_custom_call.1} parent=47 // pred_check_branch
          %480 = sbr.rel (%p478) target = $region52
        $region51: #{tpu_custom_call.1} parent=47 // pred_region
          %s481 = sand.u32 %s98, 1
          %s482 = scalar_lea.sflag [#allocation4], %s481
          %s483 = sand.u32 %s98, 1
          %s484 = smul.addr %s483, 8
          %s485 = scalar_lea.vmem [#allocation7], %s484
          %486 = dma.done %s482, 128
        $region52: #{tpu_custom_call.1} parent=47 // pred_fallthru
          _
      $region48: #{tpu_custom_call.1} parent=5 // pred_fallthru
        _
    $region6: #{tpu_custom_call.1} parent=1 // loop_footer
      %s20 = sadd.s32 1, %s16
    $region7: #{tpu_custom_call.1} parent=1 // loop_footer_branch
      %15 = sbr.rel target = $region3
    $region8: #{tpu_custom_call.1} parent=1 // loop_exit
      _
    %487 = vsyncpa [#allocation3], 1
    %s488 = scalar_lea.sflag [#allocation3], 1
    %489 = vsyncpa %s488, 1
    %490 = vsyncpa [#allocation6], 1
    %491 = vsyncpa [#allocation4], 1
    %s492 = scalar_lea.sflag [#allocation4], 1
    %493 = vsyncpa %s492, 1

</llo_original>
